<compile_context>
chip_gen: v6e
topology: v6e:2x2x1
jax: 0.10.0
libtpu: 0.0.40
codegen_flags: <defaults>
</compile_context>

<pallas_src>
import functools

import jax
import jax.numpy as jnp
from jax.experimental import pallas as pl
from jax.experimental.pallas import tpu as pltpu

EPS = 1e-5


def _resnet1d_kernel(x_ref, w1_ref, w2_ref, b1_ref, b2_ref, pos_ref, o_ref,
                     *, L, K, nb, fused, mm_dtype):
    """One grid step: nb whole batch elements, batch folded into the lane axis.

    x_ref, o_ref : (C, nb*L) f32, lane index = b*L + l (batch-major).
    w*_ref       : fused -> (C, K*C) [col = k*C + c_in];
                   else  -> (K, C, C) per-tap (C_out, C_in) matrices.
    b*_ref       : (C, 1) f32 bias (plain VPU add after the matmul).
    pos_ref      : (1, nb*L) int32, position of each lane inside its length-L
                   element (tiny input; avoids in-kernel integer mod).
    """
    x = x_ref[...]                                   # (C, NL) f32
    C, NL = x.shape
    pad = (K - 1) // 2                               # PyTorch 'same', stride=1

    pos = pos_ref[...]                               # (1, NL) int32

    # Boundary masks hoisted once and reused by BOTH convolutions: a rolled
    # tap at offset d is valid iff the source lane stays inside the same
    # length-L element (zero 'same' padding == masking the wrapped lanes).
    masks = {}
    for k in range(K):
        d = k - pad
        if d == 0:
            continue
        masks[d] = (pos >= -d) if d < 0 else (pos < (L - d))

    def taps_of(h):
        taps = []
        for k in range(K):
            d = k - pad                              # tap k reads h[:, l + d]
            if d == 0:
                taps.append(h.astype(mm_dtype))
            else:
                shifted = pltpu.roll(h, (-d) % NL, axis=1)   # == jnp.roll(h, -d)
                taps.append(jnp.where(masks[d], shifted, 0.0).astype(mm_dtype))
        return taps

    def conv_same(h, w_ref, b_ref):
        taps = taps_of(h)
        if fused:
            # Small C: stack the K taps so a single MXU matmul sees a K*C-deep
            # contraction (8-sublane aligned when C % 8 == 0 now that the
            # bias row is gone).
            stacked = jnp.concatenate(taps, axis=0)              # (K*C, NL)
            acc = jnp.dot(w_ref[...], stacked,
                          preferred_element_type=jnp.float32)
        else:
            # Large C: the contraction already fills the MXU, so accumulate K
            # matmuls and never materialize the (K*C, NL) stacked operand.
            acc = jnp.dot(w_ref[0], taps[0],
                          preferred_element_type=jnp.float32)
            for k in range(1, K):
                acc = acc + jnp.dot(w_ref[k], taps[k],
                                    preferred_element_type=jnp.float32)
        return acc + b_ref[...]                                  # VPU bias add

    def instance_norm(h):
        # Per-batch-element, two-pass (centered) statistics in f32.  The
        # broadcast back along lanes is a free (C,1) splat — no MXU matmuls,
        # no seg/seg_t helper matrices.
        parts = []
        for b in range(nb):
            hb = h[:, b * L:(b + 1) * L]                         # (C, L)
            m = jnp.mean(hb, axis=-1, keepdims=True)             # (C, 1)
            hc = hb - m
            v = jnp.mean(hc * hc, axis=-1, keepdims=True)        # biased var
            parts.append(hc * jax.lax.rsqrt(v + EPS))            # EUP rsqrt
        return parts[0] if nb == 1 else jnp.concatenate(parts, axis=1)

    h = conv_same(x, w1_ref, b1_ref)
    h = jnp.maximum(instance_norm(h), 0.0)
    h = conv_same(h, w2_ref, b2_ref)
    h = instance_norm(h)
    o_ref[...] = jnp.maximum(h + x, 0.0)


def _pick_nb(N, C, L, target_bytes):
    """Batch elements per grid step.

    The lane width nb*L must be a multiple of 128 (or cover the whole array).
    Prefer a lane-dense slab (>= 512 lanes) within the VMEM target and as many
    grid steps as possible (DMA pipelining + v7x dual-TC sharding)."""
    elem = C * L * 4
    aligned = [d for d in range(1, N + 1) if N % d == 0 and (d * L) % 128 == 0]
    if not aligned:
        # TODO(synk): halo'd L-tiling + streaming norm for sequences whose
        # folded slab cannot be 128-lane tiled; fall back to the full batch.
        return N
    good = [d for d in aligned if d * L >= 512 and d * elem <= target_bytes]
    if good:
        return min(good)
    fits = [d for d in aligned if d * elem <= target_bytes]
    return max(fits) if fits else min(aligned)


def resnet_layer_1d(x, w1, b1, w2, b2, *,
                    target_block_bytes=2 << 20,
                    mm_dtype=jnp.float32):
    """x: (N, C, L) f32; w*: (C_out, C_in, K) (PyTorch Conv1d layout); b*: (C,).

    mm_dtype=jnp.bfloat16 enables the fast MXU path for the conv operands
    (f32 accumulation; norms/residual stay f32) at the cost of small numeric
    drift vs PyTorch f32."""
    N, C, L = x.shape
    K = w1.shape[-1]

    fused = (K * C) < 256   # small contraction: fuse taps to fill MXU depth

    if fused:
        def prep(w):        # (C_out, C_in, K) -> (C_out, K*C_in)
            return jnp.transpose(w, (0, 2, 1)).reshape(C, K * C).astype(mm_dtype)
        w_spec = pl.BlockSpec((C, K * C), lambda i: (0, 0))
    else:
        def prep(w):        # (C_out, C_in, K) -> (K, C_out, C_in)
            return jnp.transpose(w, (2, 0, 1)).astype(mm_dtype)
        w_spec = pl.BlockSpec((K, C, C), lambda i: (0, 0, 0))

    w1p, w2p = prep(w1), prep(w2)
    b1c = b1.reshape(C, 1).astype(jnp.float32)
    b2c = b2.reshape(C, 1).astype(jnp.float32)

    # Fold batch into the lane axis: (N, C, L) -> (C, N*L), batch-major lanes.
    x2d = jnp.transpose(x, (1, 0, 2)).reshape(C, N * L).astype(jnp.float32)

    nb = _pick_nb(N, C, L, target_block_bytes)
    grid = (N // nb,)
    nl_blk = nb * L

    # Lane position inside its length-L element (block-invariant, a few KB).
    pos_blk = jnp.tile(jnp.arange(L, dtype=jnp.int32), nb).reshape(1, nl_blk)

    kernel = functools.partial(_resnet1d_kernel, L=L, K=K, nb=nb,
                               fused=fused, mm_dtype=mm_dtype)

    cost = pl.CostEstimate(
        flops=int(4 * N * L * K * C * C + 16 * N * C * L),
        transcendentals=int(2 * N * C),
        bytes_accessed=int(4 * (2 * N * C * L              # x in + out
                                + 2 * (K * C * C + C)      # weights + biases
                                + (N // nb) * nl_blk)),    # pos, per step
    )

    try:
        vmem_phys = pltpu.get_tpu_info().vmem_capacity_bytes
    except Exception:  # conservative default (v7x-sized VMEM)
        vmem_phys = 64 * 1024 * 1024
    vmem_limit = int(min((3 * vmem_phys) // 4,
                         max(32 * 1024 * 1024, 12 * nb * C * L * 4)))

    out2d = pl.pallas_call(
        kernel,
        out_shape=jax.ShapeDtypeStruct((C, N * L), jnp.float32),
        grid_spec=pltpu.PrefetchScalarGridSpec(
            num_scalar_prefetch=0,
            grid=grid,
            in_specs=[
                pl.BlockSpec((C, nl_blk), lambda i: (0, i)),   # x slab
                w_spec,                                        # conv1 weight
                w_spec,                                        # conv2 weight
                pl.BlockSpec((C, 1), lambda i: (0, 0)),        # bias1
                pl.BlockSpec((C, 1), lambda i: (0, 0)),        # bias2
                pl.BlockSpec((1, nl_blk), lambda i: (0, 0)),   # lane position
            ],
            out_specs=pl.BlockSpec((C, nl_blk), lambda i: (0, i)),
        ),
        compiler_params=pltpu.CompilerParams(
            dimension_semantics=("parallel",),
            vmem_limit_bytes=vmem_limit,
        ),
        cost_estimate=cost,
    )(x2d, w1p, w2p, b1c, b2c, pos_blk)

    # Back to PyTorch NCL layout.
    return out2d.reshape(C, N, L).transpose(1, 0, 2)


def _reference_forward(x, w1, b1, w2, b2):
    # Pure-JAX reference matching PyTorch semantics, for correctness check.
    def conv(h, w, b):
        out = jax.lax.conv_general_dilated(
            h, w, window_strides=(1,), padding="SAME",
            dimension_numbers=("NCH", "OIH", "NCH"))
        return out + b[None, :, None]

    def inorm(h):
        m = h.mean(-1, keepdims=True)
        v = ((h - m) ** 2).mean(-1, keepdims=True)
        return (h - m) / jnp.sqrt(v + EPS)

    h = jax.nn.relu(inorm(conv(x, w1, b1)))
    h = inorm(conv(h, w2, b2))
    return jax.nn.relu(h + x)


def _run_case(key, N, C, L, K):
    kx, kw1, kb1, kw2, kb2 = jax.random.split(key, 5)
    x = jax.random.normal(kx, (N, C, L), dtype=jnp.float32)
    # Conv1d weight shape: (C_out, C_in, K)
    w1 = 0.1 * jax.random.normal(kw1, (C, C, K), dtype=jnp.float32)
    b1 = 0.1 * jax.random.normal(kb1, (C,), dtype=jnp.float32)
    w2 = 0.1 * jax.random.normal(kw2, (C, C, K), dtype=jnp.float32)
    b2 = 0.1 * jax.random.normal(kb2, (C,), dtype=jnp.float32)

    out = jax.block_until_ready(resnet_layer_1d(x, w1, b1, w2, b2))
    ref = _reference_forward(x, w1, b1, w2, b2)
    assert out.shape == (N, C, L)
    assert jnp.allclose(out, ref, atol=1e-4, rtol=1e-4), \
        f"mismatch vs reference at (N={N}, C={C}, L={L}, K={K})"


if __name__ == "__main__":
    key = jax.random.PRNGKey(0)
    k1, k2 = jax.random.split(key)
    # Module defaults (filters=4, filter_size=3): exercises the fused
    # small-C conv path.
    _run_case(k1, N=2, C=4, L=16, K=3)
    # Wider channels: exercises the K-accumulated large-C conv path.
    _run_case(k2, N=2, C=128, L=128, K=3)
    print("KERNEL_OK")
</pallas_src>

<mosaic_0001>
module attributes {stable_mosaic.version = 11 : i64} {
  func.func @_resnet1d_kernel(%arg0: i32, %arg1: memref<4x32xf32, #tpu.memory_space<vmem>>, %arg2: memref<4x12xf32, #tpu.memory_space<vmem>>, %arg3: memref<4x12xf32, #tpu.memory_space<vmem>>, %arg4: memref<4x1xf32, #tpu.memory_space<vmem>>, %arg5: memref<4x1xf32, #tpu.memory_space<vmem>>, %arg6: memref<1x32xi32, #tpu.memory_space<vmem>>, %arg7: memref<4x32xf32, #tpu.memory_space<vmem>>) attributes {dimension_semantics = [#tpu.dimension_semantics<parallel>], iteration_bounds = array<i64: 1>, scalar_prefetch = 0 : i64, scratch_operands = 0 : i64, tpu.core_type = #tpu.core_type<tc>, window_params = [{transform_indices = @transform_0, window_bounds = array<i64: 4, 32>}, {pipeline_mode = #tpu.pipeline_mode<synchronous>, transform_indices = @transform_1, window_bounds = array<i64: 4, 12>}, {pipeline_mode = #tpu.pipeline_mode<synchronous>, transform_indices = @transform_2, window_bounds = array<i64: 4, 12>}, {pipeline_mode = #tpu.pipeline_mode<synchronous>, transform_indices = @transform_3, window_bounds = array<i64: 4, 1>}, {pipeline_mode = #tpu.pipeline_mode<synchronous>, transform_indices = @transform_4, window_bounds = array<i64: 4, 1>}, {pipeline_mode = #tpu.pipeline_mode<synchronous>, transform_indices = @transform_5, window_bounds = array<i64: 1, 32>}, {transform_indices = @transform_6, window_bounds = array<i64: 4, 32>}]} {
    %c0 = arith.constant 0 : index
    %c0_0 = arith.constant 0 : index
    %0 = vector.load %arg1[%c0, %c0_0] : memref<4x32xf32, #tpu.memory_space<vmem>>, vector<4x32xf32>
    %c0_1 = arith.constant 0 : index
    %c0_2 = arith.constant 0 : index
    %1 = vector.load %arg6[%c0_1, %c0_2] : memref<1x32xi32, #tpu.memory_space<vmem>>, vector<1x32xi32>
    %c1_i32 = arith.constant 1 : i32
    %2 = vector.broadcast %c1_i32 : i32 to vector<1x32xi32>
    %3 = arith.cmpi sge, %1, %2 : vector<1x32xi32>
    %c15_i32 = arith.constant 15 : i32
    %4 = vector.broadcast %c15_i32 : i32 to vector<1x32xi32>
    %5 = arith.cmpi slt, %1, %4 : vector<1x32xi32>
    %c1_i32_3 = arith.constant 1 : i32
    %6 = tpu.dynamic_rotate %0 by %c1_i32_3 dim 1 : vector<4x32xf32>, i32 -> vector<4x32xf32>
    %cst = arith.constant 0.000000e+00 : f32
    %7 = vector.shape_cast %3 : vector<1x32xi1> to vector<1x32xi1>
    %8 = vector.broadcast %7 : vector<1x32xi1> to vector<4x32xi1>
    %9 = vector.broadcast %cst : f32 to vector<4x32xf32>
    %10 = arith.select %8, %6, %9 : vector<4x32xi1>, vector<4x32xf32>
    %c31_i32 = arith.constant 31 : i32
    %11 = tpu.dynamic_rotate %0 by %c31_i32 dim 1 : vector<4x32xf32>, i32 -> vector<4x32xf32>
    %cst_4 = arith.constant 0.000000e+00 : f32
    %12 = vector.shape_cast %5 : vector<1x32xi1> to vector<1x32xi1>
    %13 = vector.broadcast %12 : vector<1x32xi1> to vector<4x32xi1>
    %14 = vector.broadcast %cst_4 : f32 to vector<4x32xf32>
    %15 = arith.select %13, %11, %14 : vector<4x32xi1>, vector<4x32xf32>
    %16 = tpu.concatenate %10, %0, %15 in 0 : vector<4x32xf32>, vector<4x32xf32>, vector<4x32xf32> -> vector<12x32xf32>
    %c0_5 = arith.constant 0 : index
    %c0_6 = arith.constant 0 : index
    %17 = vector.load %arg2[%c0_5, %c0_6] : memref<4x12xf32, #tpu.memory_space<vmem>>, vector<4x12xf32>
    %cst_7 = arith.constant dense<0.000000e+00> : vector<4x32xf32>
    %18 = tpu.matmul %17, %16, %cst_7 {dimension_numbers = #tpu.dot_dimension_numbers<[1], [0], [0], [1], [0, 0, 1, 1], [], []>} : vector<4x12xf32>, vector<12x32xf32>, vector<4x32xf32> -> vector<4x32xf32>
    %c0_8 = arith.constant 0 : index
    %c0_9 = arith.constant 0 : index
    %19 = vector.load %arg4[%c0_8, %c0_9] : memref<4x1xf32, #tpu.memory_space<vmem>>, vector<4x1xf32>
    %20 = vector.broadcast %19 : vector<4x1xf32> to vector<4x32xf32>
    %21 = arith.addf %18, %20 : vector<4x32xf32>
    %22 = vector.extract_strided_slice %21 {offsets = [0, 0], sizes = [4, 16], strides = [1, 1]} : vector<4x32xf32> to vector<4x16xf32>
    %cst_10 = arith.constant dense<0.000000e+00> : vector<4xf32>
    %23 = vector.multi_reduction <add>, %22, %cst_10 [1] : vector<4x16xf32> to vector<4xf32>
    %24 = vector.shape_cast %23 : vector<4xf32> to vector<4x1xf32>
    %cst_11 = arith.constant 1.600000e+01 : f32
    %25 = vector.broadcast %cst_11 : f32 to vector<4x1xf32>
    %26 = arith.divf %24, %25 : vector<4x1xf32>
    %27 = vector.broadcast %26 : vector<4x1xf32> to vector<4x16xf32>
    %28 = arith.subf %22, %27 : vector<4x16xf32>
    %29 = arith.mulf %28, %28 : vector<4x16xf32>
    %cst_12 = arith.constant dense<0.000000e+00> : vector<4xf32>
    %30 = vector.multi_reduction <add>, %29, %cst_12 [1] : vector<4x16xf32> to vector<4xf32>
    %31 = vector.shape_cast %30 : vector<4xf32> to vector<4x1xf32>
    %cst_13 = arith.constant 1.600000e+01 : f32
    %32 = vector.broadcast %cst_13 : f32 to vector<4x1xf32>
    %33 = arith.divf %31, %32 : vector<4x1xf32>
    %cst_14 = arith.constant 9.99999974E-6 : f32
    %34 = vector.broadcast %cst_14 : f32 to vector<4x1xf32>
    %35 = arith.addf %33, %34 : vector<4x1xf32>
    %36 = math.rsqrt %35 : vector<4x1xf32>
    %37 = vector.broadcast %36 : vector<4x1xf32> to vector<4x16xf32>
    %38 = arith.mulf %28, %37 : vector<4x16xf32>
    %39 = vector.extract_strided_slice %21 {offsets = [0, 16], sizes = [4, 16], strides = [1, 1]} : vector<4x32xf32> to vector<4x16xf32>
    %cst_15 = arith.constant dense<0.000000e+00> : vector<4xf32>
    %40 = vector.multi_reduction <add>, %39, %cst_15 [1] : vector<4x16xf32> to vector<4xf32>
    %41 = vector.shape_cast %40 : vector<4xf32> to vector<4x1xf32>
    %cst_16 = arith.constant 1.600000e+01 : f32
    %42 = vector.broadcast %cst_16 : f32 to vector<4x1xf32>
    %43 = arith.divf %41, %42 : vector<4x1xf32>
    %44 = vector.broadcast %43 : vector<4x1xf32> to vector<4x16xf32>
    %45 = arith.subf %39, %44 : vector<4x16xf32>
    %46 = arith.mulf %45, %45 : vector<4x16xf32>
    %cst_17 = arith.constant dense<0.000000e+00> : vector<4xf32>
    %47 = vector.multi_reduction <add>, %46, %cst_17 [1] : vector<4x16xf32> to vector<4xf32>
    %48 = vector.shape_cast %47 : vector<4xf32> to vector<4x1xf32>
    %cst_18 = arith.constant 1.600000e+01 : f32
    %49 = vector.broadcast %cst_18 : f32 to vector<4x1xf32>
    %50 = arith.divf %48, %49 : vector<4x1xf32>
    %cst_19 = arith.constant 9.99999974E-6 : f32
    %51 = vector.broadcast %cst_19 : f32 to vector<4x1xf32>
    %52 = arith.addf %50, %51 : vector<4x1xf32>
    %53 = math.rsqrt %52 : vector<4x1xf32>
    %54 = vector.broadcast %53 : vector<4x1xf32> to vector<4x16xf32>
    %55 = arith.mulf %45, %54 : vector<4x16xf32>
    %56 = tpu.concatenate %38, %55 in 1 : vector<4x16xf32>, vector<4x16xf32> -> vector<4x32xf32>
    %cst_20 = arith.constant 0.000000e+00 : f32
    %57 = vector.broadcast %cst_20 : f32 to vector<4x32xf32>
    %58 = arith.maximumf %56, %57 : vector<4x32xf32>
    %c1_i32_21 = arith.constant 1 : i32
    %59 = tpu.dynamic_rotate %58 by %c1_i32_21 dim 1 : vector<4x32xf32>, i32 -> vector<4x32xf32>
    %cst_22 = arith.constant 0.000000e+00 : f32
    %60 = vector.shape_cast %3 : vector<1x32xi1> to vector<1x32xi1>
    %61 = vector.broadcast %60 : vector<1x32xi1> to vector<4x32xi1>
    %62 = vector.broadcast %cst_22 : f32 to vector<4x32xf32>
    %63 = arith.select %61, %59, %62 : vector<4x32xi1>, vector<4x32xf32>
    %c31_i32_23 = arith.constant 31 : i32
    %64 = tpu.dynamic_rotate %58 by %c31_i32_23 dim 1 : vector<4x32xf32>, i32 -> vector<4x32xf32>
    %cst_24 = arith.constant 0.000000e+00 : f32
    %65 = vector.shape_cast %5 : vector<1x32xi1> to vector<1x32xi1>
    %66 = vector.broadcast %65 : vector<1x32xi1> to vector<4x32xi1>
    %67 = vector.broadcast %cst_24 : f32 to vector<4x32xf32>
    %68 = arith.select %66, %64, %67 : vector<4x32xi1>, vector<4x32xf32>
    %69 = tpu.concatenate %63, %58, %68 in 0 : vector<4x32xf32>, vector<4x32xf32>, vector<4x32xf32> -> vector<12x32xf32>
    %c0_25 = arith.constant 0 : index
    %c0_26 = arith.constant 0 : index
    %70 = vector.load %arg3[%c0_25, %c0_26] : memref<4x12xf32, #tpu.memory_space<vmem>>, vector<4x12xf32>
    %cst_27 = arith.constant dense<0.000000e+00> : vector<4x32xf32>
    %71 = tpu.matmul %70, %69, %cst_27 {dimension_numbers = #tpu.dot_dimension_numbers<[1], [0], [0], [1], [0, 0, 1, 1], [], []>} : vector<4x12xf32>, vector<12x32xf32>, vector<4x32xf32> -> vector<4x32xf32>
    %c0_28 = arith.constant 0 : index
    %c0_29 = arith.constant 0 : index
    %72 = vector.load %arg5[%c0_28, %c0_29] : memref<4x1xf32, #tpu.memory_space<vmem>>, vector<4x1xf32>
    %73 = vector.broadcast %72 : vector<4x1xf32> to vector<4x32xf32>
    %74 = arith.addf %71, %73 : vector<4x32xf32>
    %75 = vector.extract_strided_slice %74 {offsets = [0, 0], sizes = [4, 16], strides = [1, 1]} : vector<4x32xf32> to vector<4x16xf32>
    %cst_30 = arith.constant dense<0.000000e+00> : vector<4xf32>
    %76 = vector.multi_reduction <add>, %75, %cst_30 [1] : vector<4x16xf32> to vector<4xf32>
    %77 = vector.shape_cast %76 : vector<4xf32> to vector<4x1xf32>
    %cst_31 = arith.constant 1.600000e+01 : f32
    %78 = vector.broadcast %cst_31 : f32 to vector<4x1xf32>
    %79 = arith.divf %77, %78 : vector<4x1xf32>
    %80 = vector.broadcast %79 : vector<4x1xf32> to vector<4x16xf32>
    %81 = arith.subf %75, %80 : vector<4x16xf32>
    %82 = arith.mulf %81, %81 : vector<4x16xf32>
    %cst_32 = arith.constant dense<0.000000e+00> : vector<4xf32>
    %83 = vector.multi_reduction <add>, %82, %cst_32 [1] : vector<4x16xf32> to vector<4xf32>
    %84 = vector.shape_cast %83 : vector<4xf32> to vector<4x1xf32>
    %cst_33 = arith.constant 1.600000e+01 : f32
    %85 = vector.broadcast %cst_33 : f32 to vector<4x1xf32>
    %86 = arith.divf %84, %85 : vector<4x1xf32>
    %cst_34 = arith.constant 9.99999974E-6 : f32
    %87 = vector.broadcast %cst_34 : f32 to vector<4x1xf32>
    %88 = arith.addf %86, %87 : vector<4x1xf32>
    %89 = math.rsqrt %88 : vector<4x1xf32>
    %90 = vector.broadcast %89 : vector<4x1xf32> to vector<4x16xf32>
    %91 = arith.mulf %81, %90 : vector<4x16xf32>
    %92 = vector.extract_strided_slice %74 {offsets = [0, 16], sizes = [4, 16], strides = [1, 1]} : vector<4x32xf32> to vector<4x16xf32>
    %cst_35 = arith.constant dense<0.000000e+00> : vector<4xf32>
    %93 = vector.multi_reduction <add>, %92, %cst_35 [1] : vector<4x16xf32> to vector<4xf32>
    %94 = vector.shape_cast %93 : vector<4xf32> to vector<4x1xf32>
    %cst_36 = arith.constant 1.600000e+01 : f32
    %95 = vector.broadcast %cst_36 : f32 to vector<4x1xf32>
    %96 = arith.divf %94, %95 : vector<4x1xf32>
    %97 = vector.broadcast %96 : vector<4x1xf32> to vector<4x16xf32>
    %98 = arith.subf %92, %97 : vector<4x16xf32>
    %99 = arith.mulf %98, %98 : vector<4x16xf32>
    %cst_37 = arith.constant dense<0.000000e+00> : vector<4xf32>
    %100 = vector.multi_reduction <add>, %99, %cst_37 [1] : vector<4x16xf32> to vector<4xf32>
    %101 = vector.shape_cast %100 : vector<4xf32> to vector<4x1xf32>
    %cst_38 = arith.constant 1.600000e+01 : f32
    %102 = vector.broadcast %cst_38 : f32 to vector<4x1xf32>
    %103 = arith.divf %101, %102 : vector<4x1xf32>
    %cst_39 = arith.constant 9.99999974E-6 : f32
    %104 = vector.broadcast %cst_39 : f32 to vector<4x1xf32>
    %105 = arith.addf %103, %104 : vector<4x1xf32>
    %106 = math.rsqrt %105 : vector<4x1xf32>
    %107 = vector.broadcast %106 : vector<4x1xf32> to vector<4x16xf32>
    %108 = arith.mulf %98, %107 : vector<4x16xf32>
    %109 = tpu.concatenate %91, %108 in 1 : vector<4x16xf32>, vector<4x16xf32> -> vector<4x32xf32>
    %110 = arith.addf %109, %0 : vector<4x32xf32>
    %cst_40 = arith.constant 0.000000e+00 : f32
    %111 = vector.broadcast %cst_40 : f32 to vector<4x32xf32>
    %112 = arith.maximumf %110, %111 : vector<4x32xf32>
    %c0_41 = arith.constant 0 : index
    %c0_42 = arith.constant 0 : index
    %113 = vector.load %arg7[%c0_41, %c0_42] : memref<4x32xf32, #tpu.memory_space<vmem>>, vector<4x32xf32>
    tpu.vector_store %arg7[%c0_41, %c0_42], %112 {strides = array<i32>} : memref<4x32xf32, #tpu.memory_space<vmem>>, vector<4x32xf32>,
    return
  }
  func.func @transform_0(%arg0: i32) -> (i32, i32) {
    %c0_i32 = arith.constant 0 : i32
    %c0_i32_0 = arith.constant 0 : i32
    return %c0_i32, %arg0 : i32, i32
  }
  func.func @transform_1(%arg0: i32) -> (i32, i32) {
    %c0_i32 = arith.constant 0 : i32
    %c0_i32_0 = arith.constant 0 : i32
    %c0_i32_1 = arith.constant 0 : i32
    return %c0_i32, %c0_i32_0 : i32, i32
  }
  func.func @transform_2(%arg0: i32) -> (i32, i32) {
    %c0_i32 = arith.constant 0 : i32
    %c0_i32_0 = arith.constant 0 : i32
    %c0_i32_1 = arith.constant 0 : i32
    return %c0_i32, %c0_i32_0 : i32, i32
  }
  func.func @transform_3(%arg0: i32) -> (i32, i32) {
    %c0_i32 = arith.constant 0 : i32
    %c0_i32_0 = arith.constant 0 : i32
    %c0_i32_1 = arith.constant 0 : i32
    return %c0_i32, %c0_i32_0 : i32, i32
  }
  func.func @transform_4(%arg0: i32) -> (i32, i32) {
    %c0_i32 = arith.constant 0 : i32
    %c0_i32_0 = arith.constant 0 : i32
    %c0_i32_1 = arith.constant 0 : i32
    return %c0_i32, %c0_i32_0 : i32, i32
  }
  func.func @transform_5(%arg0: i32) -> (i32, i32) {
    %c0_i32 = arith.constant 0 : i32
    %c0_i32_0 = arith.constant 0 : i32
    %c0_i32_1 = arith.constant 0 : i32
    return %c0_i32, %c0_i32_0 : i32, i32
  }
  func.func @transform_6(%arg0: i32) -> (i32, i32) {
    %c0_i32 = arith.constant 0 : i32
    %c0_i32_0 = arith.constant 0 : i32
    return %c0_i32, %arg0 : i32, i32
  }
}

</mosaic_0001>

<llo_original>
// kernel: tpu_custom_call.1
$region0: #{tpu_custom_call.1}
  #allocation0 [shape = 'u32[]', space=smem, size = 0x4, offset = 0x4, fixed_abs, tag = 'smem constant byte address 0x4 - core index']
  #allocation1 [shape = 'u32[144,128]{1,0:T(1,128)}', space=vmem, size = 0x12000, scoped, tag = 'internal scratch']
  %s0 = inlined_call_operand.vmem [shape: f32[4,32], index: 0, kind: input, shape index: {}]
  %s1 = inlined_call_operand.vmem [shape: f32[4,12], index: 1, kind: input, shape index: {}]
  %s2 = inlined_call_operand.vmem [shape: f32[4,12], index: 2, kind: input, shape index: {}]
  %s3 = inlined_call_operand.vmem [shape: f32[4,1], index: 3, kind: input, shape index: {}]
  %s4 = inlined_call_operand.vmem [shape: f32[4,1], index: 4, kind: input, shape index: {}]
  %s5 = inlined_call_operand.vmem [shape: s32[1,32], index: 5, kind: input, shape index: {}]
  %s6 = inlined_call_operand.hbm [shape: f32[4,32], index: 6, kind: output, shape index: {}]
  %s7 = sld [smem:[#allocation0]]
  $region34: #{tpu_custom_call.1} parent=0
    _
  %s9 = ssub.s32 1, %s7
  %s10 = scalar_select 0, %s9, %s7
  $region1: #{tpu_custom_call.1} parent=0
    #allocation2 [shape = 'u8[2048]{0}', space=vmem, size = 0x800, scoped, tag = 'output window, operand 0, single buffered']
    #allocation3 [shape = 's32[1]{0}', space=sflag, size = 0x4, scoped, tag = 'scoped memory for tpu_custom_call.1']
    %11 = vsyncpa [#allocation3], 0
    // Predicated region
    $region2: #{tpu_custom_call.1} parent=1 // pred_check
      _
    $region3: #{tpu_custom_call.1} parent=1 // pred_check_branch
      %13 = sbr.rel (0) target = $region5
    $region4: #{tpu_custom_call.1} parent=1 // pred_region
      _
    $region5: #{tpu_custom_call.1} parent=1 // pred_fallthru
      _
    // Predicated region
    $region6: #{tpu_custom_call.1} parent=1 // pred_check
      _
    $region7: #{tpu_custom_call.1} parent=1 // pred_check_branch
      %15 = sbr.rel (0) target = $region9
    $region8: #{tpu_custom_call.1} parent=1 // pred_region
      _
    $region9: #{tpu_custom_call.1} parent=1 // pred_fallthru
      _
    // Predicated region
    $region10: #{tpu_custom_call.1} parent=1 // pred_check
      _
    $region11: #{tpu_custom_call.1} parent=1 // pred_check_branch
      %17 = sbr.rel (0) target = $region13
    $region12: #{tpu_custom_call.1} parent=1 // pred_region
      _
    $region13: #{tpu_custom_call.1} parent=1 // pred_fallthru
      _
    // Predicated region
    $region14: #{tpu_custom_call.1} parent=1 // pred_check
      _
    $region15: #{tpu_custom_call.1} parent=1 // pred_check_branch
      %19 = sbr.rel (0) target = $region17
    $region16: #{tpu_custom_call.1} parent=1 // pred_region
      _
    $region17: #{tpu_custom_call.1} parent=1 // pred_fallthru
      _
    // Predicated region
    $region18: #{tpu_custom_call.1} parent=1 // pred_check
      _
    $region19: #{tpu_custom_call.1} parent=1 // pred_check_branch
      %21 = sbr.rel (0) target = $region21
    $region20: #{tpu_custom_call.1} parent=1 // pred_region
      _
    $region21: #{tpu_custom_call.1} parent=1 // pred_fallthru
      _
    // Predicated region
    $region22: #{tpu_custom_call.1} parent=1 // pred_check
      _
    $region23: #{tpu_custom_call.1} parent=1 // pred_check_branch
      %23 = sbr.rel (0) target = $region25
    $region24: #{tpu_custom_call.1} parent=1 // pred_region
      _
    $region25: #{tpu_custom_call.1} parent=1 // pred_fallthru
      _
    %v24 = vld [vmem:[%s0] sm:$0xf]
    %v25 = vld [vmem:[%s5] sm:$0x1]
    %vm26 = vcmp.ge.s32.totalorder %v25, 1
    %vm27 = vcmp.lt.s32.totalorder %v25, 15
    %vm28 = vcmask 1047808
    %29 = vrot.lane.b32.xlu0 %v24, 32
    %v30 = vpop.permute.xlu0 %29
    %v31 = vsel %vm28, %v30, %v24
    %32 = vrot.lane.b32.xlu0 %v31, 32
    %v33 = vpop.permute.xlu0 %32
    %v34 = vsel %vm28, %v33, %v24
    %v35 = vsel %vm26, 1, 0
    %v36 = vlaneseq
    %v37 = vshrl.u32 %v36, 7
    %v38 = vsub.s32 0, %v37
    %v39 = vrot.slane %v35, %v38
    %vm40 = vcmp.eq.s32.totalorder %v39, 1
    %42 = vrot.lane.b32.xlu0 %v34, 97
    %v43 = vpop.permute.xlu0 %42
    %v45 = vsel %vm40, %v43, 0.0
    %v46 = vsel %vm27, 1, 0
    %v47 = vlaneseq
    %v48 = vshrl.u32 %v47, 7
    %v49 = vsub.s32 0, %v48
    %v50 = vrot.slane %v46, %v49
    %vm51 = vcmp.eq.s32.totalorder %v50, 1
    %52 = vrot.lane.b32.xlu0 %v34, 127
    %v53 = vpop.permute.xlu0 %52
    %v55 = vsel %vm51, %v53, 0.0
    %v57 = vrot.slane %v24, 4
    %vm59 = vcmask 1043456
    %v60 = vsel %vm59, %v45, %v57
    %v61 = vld [vmem:[%s1] sm:$0xf]
    %v62 = vld [vmem:[%s3] sm:$0xf]
    %64 = vset.pattern.permute.xlu0 0
    %65 = vperm.xlu0 %64, %v62
    %v66 = vpop.permute.xlu0 %65
    %vm68 = vcmask 97280
    %v70 = vsel %vm68, %v61, 0
    %v73 = vsel %vm59, %v55, 0
    %75 = vmatprep.subr.mxu0 0.0
    %76 = vmatpush1.msra.mxu0 0.0
    %77 = vmatprep.subr.mxu0 0.0
    %78 = vmatpush1.msra.mxu0 0.0
    %79 = vmatprep.subr.mxu0 0.0
    %80 = vmatpush1.msra.mxu0 0.0
    %81 = vmatprep.subr.mxu0 0.0
    %82 = vmatpush1.msra.mxu0 0.0
    %83 = vmatprep.subr.mxu0 0.0
    %84 = vmatpush1.msra.mxu0 0.0
    %85 = vmatprep.subr.mxu0 0.0
    %86 = vmatpush1.msra.mxu0 0.0
    %87 = vmatprep.subr.mxu0 0.0
    %88 = vmatpush1.msra.mxu0 0.0
    %89 = vmatprep.subr.mxu0 0.0
    %90 = vmatpush1.msra.mxu0 0.0
    %91 = vmatprep.subr.mxu0 0.0
    %92 = vmatpush1.msra.mxu0 0.0
    %93 = vmatprep.subr.mxu0 0.0
    %94 = vmatpush1.msra.mxu0 0.0
    %95 = vmatprep.subr.mxu0 0.0
    %96 = vmatpush1.msra.mxu0 0.0
    %97 = vmatprep.subr.mxu0 0.0
    %98 = vmatpush1.msra.mxu0 0.0
    %99 = vmatprep.subr.mxu0 0.0
    %100 = vmatpush1.msra.mxu0 0.0
    %101 = vmatprep.subr.mxu0 0.0
    %102 = vmatpush1.msra.mxu0 0.0
    %103 = vmatprep.subr.mxu0 0.0
    %104 = vmatpush1.msra.mxu0 %v73
    %105 = vmatprep.subr.mxu0 0.0
    %106 = vmatpush1.msra.mxu0 %v60
    %107 = vmatprep.subr.mxu0 0.0
    %108 = vmatpush2.msra.mxu0 0.0
    %109 = vmatprep.subr.mxu0 0.0
    %110 = vmatpush2.msra.mxu0 0.0
    %111 = vmatprep.subr.mxu0 0.0
    %112 = vmatpush2.msra.mxu0 0.0
    %113 = vmatprep.subr.mxu0 0.0
    %114 = vmatpush2.msra.mxu0 0.0
    %115 = vmatprep.subr.mxu0 0.0
    %116 = vmatpush2.msra.mxu0 0.0
    %117 = vmatprep.subr.mxu0 0.0
    %118 = vmatpush2.msra.mxu0 0.0
    %119 = vmatprep.subr.mxu0 0.0
    %120 = vmatpush2.msra.mxu0 0.0
    %121 = vmatprep.subr.mxu0 0.0
    %122 = vmatpush2.msra.mxu0 0.0
    %123 = vmatprep.subr.mxu0 0.0
    %124 = vmatpush2.msra.mxu0 0.0
    %125 = vmatprep.subr.mxu0 0.0
    %126 = vmatpush2.msra.mxu0 0.0
    %127 = vmatprep.subr.mxu0 0.0
    %128 = vmatpush2.msra.mxu0 0.0
    %129 = vmatprep.subr.mxu0 0.0
    %130 = vmatpush2.msra.mxu0 0.0
    %131 = vmatprep.subr.mxu0 0.0
    %132 = vmatpush2.msra.mxu0 0.0
    %133 = vmatprep.subr.mxu0 0.0
    %134 = vmatpush2.msra.mxu0 0.0
    %135 = vmatprep.subr.mxu0 0.0
    %136 = vmatpush2.msra.mxu0 0.0
    %137 = vmatprep.subr.mxu0 0.0
    %138 = vmatpush2.msra.mxu0 0.0
    %139 = vmatprep.mubr.f32.mxu0 0.0
    %140 = vmatmul.mubr.f32.gmra.mxu0 %v70
    %v141 = vpop.f32.mrf.mxu0
    %v142 = vadd.f32 %v66, %v141
    %v143 = vpop.f32.mrf.mxu0
    %144 = vdwg.mxu0
    %vm145 = vcmask 125952
    %v146 = vsel %vm145, %v142, 0.0
    %147 = vadd.xlane.f32.xlu0 %v146
    %v148 = vpop.xlane.xlu0 %147
    %v149 = vrcp.pop 16.0
    %v150 = vmul.f32 %v148, %v149
    %v151 = vsub.f32 %v142, %v150
    %v152 = vmul.f32 %v151, %v151
    %v153 = vsel %vm145, %v152, 0.0
    %154 = vadd.xlane.f32.xlu0 %v153
    %v155 = vpop.xlane.xlu0 %154
    %v156 = vmul.f32 %v155, %v149
    %v157 = vadd.f32 %v156, 1e-05
    %v158 = vrsqrt.pop %v157
    %v159 = vmul.f32 %v151, %v158
    %161 = vrot.lane.b32.xlu0 %v142, 112
    %v162 = vpop.permute.xlu0 %161
    %v164 = vsel %vm145, %v162, 0.0
    %165 = vadd.xlane.f32.xlu0 %v164
    %v166 = vpop.xlane.xlu0 %165
    %v167 = vmul.f32 %v166, %v149
    %v168 = vsub.f32 %v142, %v167
    %v169 = vmul.f32 %v168, %v168
    %171 = vrot.lane.b32.xlu0 %v169, 112
    %v172 = vpop.permute.xlu0 %171
    %v174 = vsel %vm145, %v172, 0.0
    %175 = vadd.xlane.f32.xlu0 %v174
    %v176 = vpop.xlane.xlu0 %175
    %v177 = vmul.f32 %v176, %v149
    %v178 = vadd.f32 %v177, 1e-05
    %v179 = vrsqrt.pop %v178
    %v180 = vmul.f32 %v168, %v179
    %vm181 = vcmask 130048
    %v182 = vsel %vm181, %v159, %v180
    %v183 = vmax.f32 %v182, 0.0
    %184 = vrot.lane.b32.xlu0 %v183, 32
    %v185 = vpop.permute.xlu0 %184
    %v186 = vsel %vm28, %v185, %v183
    %187 = vrot.lane.b32.xlu0 %v186, 32
    %v188 = vpop.permute.xlu0 %187
    %v189 = vsel %vm28, %v188, %v183
    %191 = vrot.lane.b32.xlu0 %v189, 97
    %v192 = vpop.permute.xlu0 %191
    %v194 = vsel %vm40, %v192, 0.0
    %195 = vrot.lane.b32.xlu0 %v189, 127
    %v196 = vpop.permute.xlu0 %195
    %v198 = vsel %vm51, %v196, 0.0
    %v200 = vrot.slane %v183, 4
    %v202 = vsel %vm59, %v194, %v200
    %v203 = vld [vmem:[%s2] sm:$0xf]
    %v204 = vld [vmem:[%s4] sm:$0xf]
    %206 = vset.pattern.permute.xlu0 0
    %207 = vperm.xlu0 %206, %v204
    %v208 = vpop.permute.xlu0 %207
    %v211 = vsel %vm68, %v203, 0
    %v214 = vsel %vm59, %v198, 0
    %216 = vmatprep.subr.mxu0 0.0
    %217 = vmatpush1.msra.mxu0 0.0
    %218 = vmatprep.subr.mxu0 0.0
    %219 = vmatpush1.msra.mxu0 0.0
    %220 = vmatprep.subr.mxu0 0.0
    %221 = vmatpush1.msra.mxu0 0.0
    %222 = vmatprep.subr.mxu0 0.0
    %223 = vmatpush1.msra.mxu0 0.0
    %224 = vmatprep.subr.mxu0 0.0
    %225 = vmatpush1.msra.mxu0 0.0
    %226 = vmatprep.subr.mxu0 0.0
    %227 = vmatpush1.msra.mxu0 0.0
    %228 = vmatprep.subr.mxu0 0.0
    %229 = vmatpush1.msra.mxu0 0.0
    %230 = vmatprep.subr.mxu0 0.0
    %231 = vmatpush1.msra.mxu0 0.0
    %232 = vmatprep.subr.mxu0 0.0
    %233 = vmatpush1.msra.mxu0 0.0
    %234 = vmatprep.subr.mxu0 0.0
    %235 = vmatpush1.msra.mxu0 0.0
    %236 = vmatprep.subr.mxu0 0.0
    %237 = vmatpush1.msra.mxu0 0.0
    %238 = vmatprep.subr.mxu0 0.0
    %239 = vmatpush1.msra.mxu0 0.0
    %240 = vmatprep.subr.mxu0 0.0
    %241 = vmatpush1.msra.mxu0 0.0
    %242 = vmatprep.subr.mxu0 0.0
    %243 = vmatpush1.msra.mxu0 0.0
    %244 = vmatprep.subr.mxu0 0.0
    %245 = vmatpush1.msra.mxu0 %v214
    %246 = vmatprep.subr.mxu0 0.0
    %247 = vmatpush1.msra.mxu0 %v202
    %248 = vmatprep.subr.mxu0 0.0
    %249 = vmatpush2.msra.mxu0 0.0
    %250 = vmatprep.subr.mxu0 0.0
    %251 = vmatpush2.msra.mxu0 0.0
    %252 = vmatprep.subr.mxu0 0.0
    %253 = vmatpush2.msra.mxu0 0.0
    %254 = vmatprep.subr.mxu0 0.0
    %255 = vmatpush2.msra.mxu0 0.0
    %256 = vmatprep.subr.mxu0 0.0
    %257 = vmatpush2.msra.mxu0 0.0
    %258 = vmatprep.subr.mxu0 0.0
    %259 = vmatpush2.msra.mxu0 0.0
    %260 = vmatprep.subr.mxu0 0.0
    %261 = vmatpush2.msra.mxu0 0.0
    %262 = vmatprep.subr.mxu0 0.0
    %263 = vmatpush2.msra.mxu0 0.0
    %264 = vmatprep.subr.mxu0 0.0
    %265 = vmatpush2.msra.mxu0 0.0
    %266 = vmatprep.subr.mxu0 0.0
    %267 = vmatpush2.msra.mxu0 0.0
    %268 = vmatprep.subr.mxu0 0.0
    %269 = vmatpush2.msra.mxu0 0.0
    %270 = vmatprep.subr.mxu0 0.0
    %271 = vmatpush2.msra.mxu0 0.0
    %272 = vmatprep.subr.mxu0 0.0
    %273 = vmatpush2.msra.mxu0 0.0
    %274 = vmatprep.subr.mxu0 0.0
    %275 = vmatpush2.msra.mxu0 0.0
    %276 = vmatprep.subr.mxu0 0.0
    %277 = vmatpush2.msra.mxu0 0.0
    %278 = vmatprep.subr.mxu0 0.0
    %279 = vmatpush2.msra.mxu0 0.0
    %280 = vmatprep.mubr.f32.mxu0 0.0
    %281 = vmatmul.mubr.f32.gmra.mxu0 %v211
    %v282 = vpop.f32.mrf.mxu0
    %v283 = vadd.f32 %v208, %v282
    %v284 = vpop.f32.mrf.mxu0
    %285 = vdwg.mxu0
    %v286 = vsel %vm145, %v283, 0.0
    %287 = vadd.xlane.f32.xlu0 %v286
    %v288 = vpop.xlane.xlu0 %287
    %v289 = vmul.f32 %v288, %v149
    %v290 = vsub.f32 %v283, %v289
    %v291 = vmul.f32 %v290, %v290
    %v292 = vsel %vm145, %v291, 0.0
    %293 = vadd.xlane.f32.xlu0 %v292
    %v294 = vpop.xlane.xlu0 %293
    %v295 = vmul.f32 %v294, %v149
    %v296 = vadd.f32 %v295, 1e-05
    %v297 = vrsqrt.pop %v296
    %v298 = vmul.f32 %v290, %v297
    %300 = vrot.lane.b32.xlu0 %v283, 112
    %v301 = vpop.permute.xlu0 %300
    %v303 = vsel %vm145, %v301, 0.0
    %304 = vadd.xlane.f32.xlu0 %v303
    %v305 = vpop.xlane.xlu0 %304
    %v306 = vmul.f32 %v305, %v149
    %v307 = vsub.f32 %v283, %v306
    %v308 = vmul.f32 %v307, %v307
    %310 = vrot.lane.b32.xlu0 %v308, 112
    %v311 = vpop.permute.xlu0 %310
    %v313 = vsel %vm145, %v311, 0.0
    %314 = vadd.xlane.f32.xlu0 %v313
    %v315 = vpop.xlane.xlu0 %314
    %v316 = vmul.f32 %v315, %v149
    %v317 = vadd.f32 %v316, 1e-05
    %v318 = vrsqrt.pop %v317
    %v319 = vmul.f32 %v307, %v318
    %v320 = vsel %vm181, %v298, %v319
    %v321 = vadd.f32 %v320, %v24
    %v322 = vmax.f32 %v321, 0.0
    %vm323 = vcmask 257024
    %324 = vst.msk [vmem:[#allocation2] sm:$0xf] %vm323, %v322
    // Predicated region
    $region26: #{tpu_custom_call.1} parent=1 // pred_check
      _
    $region27: #{tpu_custom_call.1} parent=1 // pred_check_branch
      %326 = sbr.rel (0) target = $region29
    $region28: #{tpu_custom_call.1} parent=1 // pred_region
      %s328 = ssub.s32 64, 64
      %329 = vsyncadd [#allocation3], %s328
      %s331 = sshll.u32 [#allocation2], 4
      %s332 = int_to_ptr.vmem [resolvable:$true] %s331
      %334 = dma.vmem_to_hbm [thread:$0]  %s332, 64, %s6, [#allocation3]
    $region29: #{tpu_custom_call.1} parent=1 // pred_fallthru
      _
    // Predicated region
    $region30: #{tpu_custom_call.1} parent=1 // pred_check
      _
    $region31: #{tpu_custom_call.1} parent=1 // pred_check_branch
      %336 = sbr.rel (0) target = $region33
    $region32: #{tpu_custom_call.1} parent=1 // pred_region
      %337 = dma.done [#allocation3], 64
    $region33: #{tpu_custom_call.1} parent=1 // pred_fallthru
      _
    %338 = vsyncpa [#allocation3], 1

</llo_original>
